<compile_context>
chip_gen: v6e
topology: v6e:2x2x1
jax: 0.10.0
libtpu: 0.0.40
codegen_flags: <defaults>
</compile_context>

<pallas_src>
import functools

import jax
import jax.numpy as jnp
from jax.experimental import pallas as pl
from jax.experimental.pallas import tpu as pltpu


def _fuzzy_pool_kernel(x_ref, q_ref, o_ref, *, inv_area):
    # x_ref: (TM, Kg)  -- each row = g packed output rows' k x Wu slabs
    # q_ref: (Kg, Wog) -- block-diagonal 0/1 pooling matrix (no mean factor)
    # o_ref: (TM, Wog)
    x = x_ref[...]
    if x.dtype != jnp.bfloat16:
        # f32/других inputs: upcast for exact elementwise math (v5e has no
        # bf16 VPU/EUP anyway); bf16 inputs stay bf16 end-to-end (v6e/v7x).
        x = x.astype(jnp.float32)
    # fuzzify: value * membership, membership = exp(-x^2 / 2)   (EUP + VPU)
    f = x * jnp.exp(-0.5 * (x * x))
    # MXU contraction in the Q dtype (bf16 for bf16 inputs, f32 otherwise),
    # always accumulating in f32.
    out = jnp.dot(f.astype(q_ref.dtype), q_ref[...],
                  preferred_element_type=jnp.float32)
    # 1/k^2 mean factor as a single f32 VPU multiply on the small result.
    o_ref[...] = (out * inv_area).astype(o_ref.dtype)


def _pick_lane_packing(K, Wo, q_itemsize, q_budget=2 << 20):
    """g output rows packed per kernel row so the output last dim is >= 128
    (full-lane stores).  Capped so the block-diagonal Q stays small."""
    if Wo >= 128:
        return 1
    g = -(-128 // Wo)  # ceil(128 / Wo); ~256/Wo would also be fine on v6e/v7x
    while g > 1 and (g * K) * (g * Wo) * q_itemsize > q_budget:
        g -= 1
    return max(1, g)


def _pick_row_tile(Mg, Kg, Wog, in_itemsize, compute_itemsize, q_bytes,
                   target_bytes=6 << 20):
    """Row tile (multiple of 8) budgeting every VMEM resident, not just the
    input block: 2x input (double-buffered) + f32 fuzzified intermediate +
    cast copy + 2x output + Q.  Also caps the tile so large problems get >= 4
    grid blocks (v7x: 2 TCs x >= 2 pipeline steps each)."""
    if Mg <= 8:
        return int(Mg)  # full-extent block is always layout-legal
    per_row = Kg * (2 * in_itemsize + 4 + compute_itemsize) + Wog * 8
    budget = max(per_row * 8, target_bytes - q_bytes)
    tm = max(8, (budget // per_row) // 8 * 8)
    if Mg >= 16:
        tm = min(tm, max(8, (Mg // 4) // 8 * 8))   # >= 2-4 grid blocks
    tm = min(tm, ((Mg + 7) // 8) * 8)              # never exceed padded rows
    return int(tm)


def fuzzy_pooling(x, kernel_size, stride=None, padding=0):
    """Pallas equivalent of FuzzyPooling.forward. x: (B, C, H, W)."""
    stride = stride if stride else kernel_size
    # TODO(synk): only stride == kernel_size (the PyTorch default) is supported;
    # overlapping strides would need pl.Element offsets in the index map.
    assert stride == kernel_size, "only stride == kernel_size supported"
    k = int(kernel_size)
    B, C, H, W = x.shape
    if padding > 0:
        x = jnp.pad(x, ((0, 0), (0, 0), (padding, padding), (padding, padding)))
    # Matches the PyTorch module exactly: output dims come from the *un-padded* H/W.
    Ho = (H - k) // stride + 1
    Wo = (W - k) // stride + 1
    Hu, Wu = Ho * k, Wo * k             # region of the (padded) input actually used
    BC = B * C

    in_dtype = x.dtype
    compute_dtype = jnp.bfloat16 if in_dtype == jnp.bfloat16 else jnp.float32
    in_isz = jnp.dtype(in_dtype).itemsize
    cp_isz = jnp.dtype(compute_dtype).itemsize

    M, K = BC * Ho, k * Wu

    # Lane-packing factor and row tiling.
    g = _pick_lane_packing(K, Wo, cp_isz)
    Kg, Wog = g * K, g * Wo
    Mg = -(-M // g)                      # packed row count (pre tile-padding)
    q_bytes = Kg * Wog * cp_isz
    TM = _pick_row_tile(Mg, Kg, Wog, in_isz, cp_isz, q_bytes)
    Mg_pad = -(-Mg // TM) * TM
    rows_pad = Mg_pad * g                # unpacked rows after padding

    # NCHW -> (BC, Hp, Wp) is a free leading-dim reshape; crop to the used
    # region (a no-op when padding == 0 and H, W are multiples of k); then a
    # row-major reshape so kernel row m holds the k x Wu slabs of output rows
    # [m*g, (m+1)*g).  Padded rows are zeros -> fuzzify/pool to 0, sliced off.
    xr = x.reshape(BC, x.shape[2], x.shape[3])[:, :Hu, :Wu]
    xk = xr.reshape(M, K)
    if rows_pad != M:
        xk = jnp.pad(xk, ((0, rows_pad - M), (0, 0)))
    xkp = xk.reshape(Mg_pad, Kg)

    # Block-diagonal 0/1 pooling matrix (no 1/k^2 factor -- applied in-kernel):
    # Q[t*K + r*Wu + w, t*Wo + j] = 1  iff column w lies in W-window j.
    e = jnp.arange(Kg)
    t_e = e // K
    w_e = (e % K) % Wu
    c = jnp.arange(Wog)
    t_c = c // Wo
    j_c = c % Wo
    Q = ((t_e[:, None] == t_c[None, :])
         & (w_e[:, None] >= (j_c * stride)[None, :])
         & (w_e[:, None] < (j_c * stride + k)[None, :])).astype(compute_dtype)

    kernel = functools.partial(_fuzzy_pool_kernel, inv_area=1.0 / float(k * k))

    out = pl.pallas_call(
        kernel,
        out_shape=jax.ShapeDtypeStruct((Mg_pad, Wog), in_dtype),
        grid_spec=pltpu.PrefetchScalarGridSpec(
            num_scalar_prefetch=0,
            grid=(Mg_pad // TM,),
            in_specs=[
                pl.BlockSpec((TM, Kg), lambda i: (i, 0)),
                pl.BlockSpec((Kg, Wog), lambda i: (0, 0)),
            ],
            out_specs=pl.BlockSpec((TM, Wog), lambda i: (i, 0)),
        ),
        compiler_params=pltpu.CompilerParams(
            dimension_semantics=("parallel",),
            vmem_limit_bytes=32 * 1024 * 1024,
        ),
    )(xkp, Q)

    # (Mg_pad, g*Wo) -> (rows_pad, Wo) -> drop padded rows -> (B, C, Ho, Wo).
    return out.reshape(rows_pad, Wo)[:M].reshape(B, C, Ho, Wo)


def fuzzy_pooling_ref(x, kernel_size, stride=None, padding=0):
    """Plain-JAX reference mirroring the PyTorch loop semantics."""
    stride = stride if stride else kernel_size
    B, C, H, W = x.shape
    if padding > 0:
        x = jnp.pad(x, ((0, 0), (0, 0), (padding, padding), (padding, padding)))
    Ho = (H - kernel_size) // stride + 1
    Wo = (W - kernel_size) // stride + 1
    out = jnp.zeros((B, C, Ho, Wo), jnp.float32)
    for i in range(Ho):
        for j in range(Wo):
            r = x[:, :, i * stride:i * stride + kernel_size,
                        j * stride:j * stride + kernel_size]
            f = jnp.exp(-r ** 2 / 2.0) * r
            out = out.at[:, :, i, j].set(f.reshape(B, C, -1).mean(-1))
    return out


if __name__ == "__main__":
    key = jax.random.PRNGKey(0)
    x = jax.random.normal(key, (2, 4, 16, 16), dtype=jnp.float32)

    # main case: kernel_size=2, no padding (f32 path, 1e-5 accurate)
    y = fuzzy_pooling(x, kernel_size=2)
    y = jax.block_until_ready(y)
    y_ref = fuzzy_pooling_ref(x, kernel_size=2)
    assert y.shape == (2, 4, 8, 8), y.shape
    assert jnp.allclose(y, y_ref, atol=1e-5, rtol=1e-5), \
        float(jnp.max(jnp.abs(y - y_ref)))

    # secondary case: kernel_size=3 with padding=1 (exercises crop + row-pad path)
    y2 = fuzzy_pooling(x, kernel_size=3, padding=1)
    y2 = jax.block_until_ready(y2)
    y2_ref = fuzzy_pooling_ref(x, kernel_size=3, padding=1)
    assert y2.shape == y2_ref.shape, (y2.shape, y2_ref.shape)
    assert jnp.allclose(y2, y2_ref, atol=1e-5, rtol=1e-5), \
        float(jnp.max(jnp.abs(y2 - y2_ref)))

    # bf16 case: bf16 in / bf16 out, bf16 MXU operands (looser tolerance)
    xb = x.astype(jnp.bfloat16)
    y3 = jax.block_until_ready(fuzzy_pooling(xb, kernel_size=2))
    y3_ref = fuzzy_pooling_ref(xb.astype(jnp.float32), kernel_size=2)
    assert y3.dtype == jnp.bfloat16, y3.dtype
    assert jnp.allclose(y3.astype(jnp.float32), y3_ref, atol=2e-2, rtol=2e-2), \
        float(jnp.max(jnp.abs(y3.astype(jnp.float32) - y3_ref)))

    print("KERNEL_OK")
</pallas_src>

<mosaic_0001>
module attributes {stable_mosaic.version = 11 : i64} {
  func.func @_fuzzy_pool_kernel(%arg0: i32, %arg1: memref<4x512xf32, #tpu.memory_space<vmem>>, %arg2: memref<512x128xf32, #tpu.memory_space<vmem>>, %arg3: memref<4x128xf32, #tpu.memory_space<vmem>>) attributes {dimension_semantics = [#tpu.dimension_semantics<parallel>], iteration_bounds = array<i64: 1>, scalar_prefetch = 0 : i64, scratch_operands = 0 : i64, tpu.core_type = #tpu.core_type<tc>, window_params = [{transform_indices = @transform_0, window_bounds = array<i64: 4, 512>}, {pipeline_mode = #tpu.pipeline_mode<synchronous>, transform_indices = @transform_1, window_bounds = array<i64: 512, 128>}, {transform_indices = @transform_2, window_bounds = array<i64: 4, 128>}]} {
    %c0 = arith.constant 0 : index
    %c0_0 = arith.constant 0 : index
    %0 = vector.load %arg1[%c0, %c0_0] : memref<4x512xf32, #tpu.memory_space<vmem>>, vector<4x512xf32>
    %1 = arith.mulf %0, %0 : vector<4x512xf32>
    %cst = arith.constant -5.000000e-01 : f32
    %2 = vector.broadcast %cst : f32 to vector<4x512xf32>
    %3 = arith.mulf %2, %1 : vector<4x512xf32>
    %4 = math.exp %3 : vector<4x512xf32>
    %5 = arith.mulf %0, %4 : vector<4x512xf32>
    %c0_1 = arith.constant 0 : index
    %c0_2 = arith.constant 0 : index
    %6 = vector.load %arg2[%c0_1, %c0_2] : memref<512x128xf32, #tpu.memory_space<vmem>>, vector<512x128xf32>
    %cst_3 = arith.constant dense<0.000000e+00> : vector<4x128xf32>
    %7 = tpu.matmul %5, %6, %cst_3 {dimension_numbers = #tpu.dot_dimension_numbers<[1], [0], [0], [1], [0, 0, 1, 1], [], []>} : vector<4x512xf32>, vector<512x128xf32>, vector<4x128xf32> -> vector<4x128xf32>
    %cst_4 = arith.constant 2.500000e-01 : f32
    %8 = vector.broadcast %cst_4 : f32 to vector<4x128xf32>
    %9 = arith.mulf %7, %8 : vector<4x128xf32>
    %c0_5 = arith.constant 0 : index
    %c0_6 = arith.constant 0 : index
    %10 = vector.load %arg3[%c0_5, %c0_6] : memref<4x128xf32, #tpu.memory_space<vmem>>, vector<4x128xf32>
    tpu.vector_store %arg3[%c0_5, %c0_6], %9 {strides = array<i32>} : memref<4x128xf32, #tpu.memory_space<vmem>>, vector<4x128xf32>,
    return
  }
  func.func @transform_0(%arg0: i32) -> (i32, i32) {
    %c0_i32 = arith.constant 0 : i32
    %c0_i32_0 = arith.constant 0 : i32
    return %arg0, %c0_i32 : i32, i32
  }
  func.func @transform_1(%arg0: i32) -> (i32, i32) {
    %c0_i32 = arith.constant 0 : i32
    %c0_i32_0 = arith.constant 0 : i32
    %c0_i32_1 = arith.constant 0 : i32
    return %c0_i32, %c0_i32_0 : i32, i32
  }
  func.func @transform_2(%arg0: i32) -> (i32, i32) {
    %c0_i32 = arith.constant 0 : i32
    %c0_i32_0 = arith.constant 0 : i32
    return %arg0, %c0_i32 : i32, i32
  }
}

</mosaic_0001>

<llo_original>
// kernel: tpu_custom_call.1
$region0: #{tpu_custom_call.1}
  #allocation0 [shape = 'u32[]', space=smem, size = 0x4, offset = 0x4, fixed_abs, tag = 'smem constant byte address 0x4 - core index']
  #allocation1 [shape = 'u32[144,128]{1,0:T(1,128)}', space=vmem, size = 0x12000, scoped, tag = 'internal scratch']
  %s0 = inlined_call_operand.hbm [shape: f32[4,512], index: 0, kind: input, shape index: {}]
  %s1 = inlined_call_operand.hbm [shape: f32[512,128], index: 1, kind: input, shape index: {}]
  %s2 = inlined_call_operand.hbm [shape: f32[4,128], index: 2, kind: output, shape index: {}]
  %s3 = sld [smem:[#allocation0]]
  $region26: #{tpu_custom_call.1} parent=0
    _
  %s5 = ssub.s32 1, %s3
  %s6 = scalar_select 0, %s5, %s3
  $region1: #{tpu_custom_call.1} parent=0
    #allocation2 [shape = 'u8[8192]{0}', space=vmem, size = 0x2000, scoped, tag = 'input window, operand 0, single buffered']
    #allocation3 [shape = 's32[1]{0}', space=sflag, size = 0x4, scoped, tag = 'scoped memory for tpu_custom_call.1']
    #allocation4 [shape = 's32[1]{0}', space=sflag, size = 0x4, scoped, tag = 'scoped memory for tpu_custom_call.1']
    #allocation5 [shape = 'u8[262144]{0}', space=vmem, size = 0x40000, scoped, tag = 'input window, operand 1, single buffered']
    #allocation6 [shape = 's32[1]{0}', space=sflag, size = 0x4, scoped, tag = 'scoped memory for tpu_custom_call.1']
    #allocation7 [shape = 'u8[2048]{0}', space=vmem, size = 0x800, scoped, tag = 'output window, operand 0, single buffered']
    %7 = vsyncpa [#allocation3], 0
    %8 = vsyncpa [#allocation6], 0
    %9 = vsyncpa [#allocation4], 0
    // Predicated region
    $region2: #{tpu_custom_call.1} parent=1 // pred_check
      _
    $region3: #{tpu_custom_call.1} parent=1 // pred_check_branch
      %11 = sbr.rel (0) target = $region5
    $region4: #{tpu_custom_call.1} parent=1 // pred_region
      %s13 = ssub.s32 256, 256
      %14 = vsyncadd [#allocation3], %s13
      %s16 = sshll.u32 [#allocation2], 4
      %s17 = int_to_ptr.vmem [resolvable:$true] %s16
      %19 = dma.hbm_to_vmem [thread:$0]  %s0, 256, %s17, [#allocation3]
    $region5: #{tpu_custom_call.1} parent=1 // pred_fallthru
      _
    // Predicated region
    $region6: #{tpu_custom_call.1} parent=1 // pred_check
      _
    $region7: #{tpu_custom_call.1} parent=1 // pred_check_branch
      %21 = sbr.rel (0) target = $region9
    $region8: #{tpu_custom_call.1} parent=1 // pred_region
      %s23 = ssub.s32 8192, 8192
      %24 = vsyncadd [#allocation6], %s23
      %s25 = sshll.u32 [#allocation5], 4
      %s26 = int_to_ptr.vmem [resolvable:$true] %s25
      %31 = dma.hbm_to_vmem [thread:$0]  %s1, 8192, %s26, [#allocation6], 128, 128, 8
    $region9: #{tpu_custom_call.1} parent=1 // pred_fallthru
      _
    // Predicated region
    $region10: #{tpu_custom_call.1} parent=1 // pred_check
      _
    $region11: #{tpu_custom_call.1} parent=1 // pred_check_branch
      %33 = sbr.rel (0) target = $region13
    $region12: #{tpu_custom_call.1} parent=1 // pred_region
      %34 = dma.done [#allocation3], 256
    $region13: #{tpu_custom_call.1} parent=1 // pred_fallthru
      _
    // Predicated region
    $region14: #{tpu_custom_call.1} parent=1 // pred_check
      _
    $region15: #{tpu_custom_call.1} parent=1 // pred_check_branch
      %36 = sbr.rel (0) target = $region17
    $region16: #{tpu_custom_call.1} parent=1 // pred_region
      %37 = dma.done [#allocation6], 8192
    $region17: #{tpu_custom_call.1} parent=1 // pred_fallthru
      _
    %v38 = vld [vmem:[#allocation2] sm:$0xff]
    %v39 = vld [vmem:[#allocation2 + $0x8] sm:$0xff]
    %v40 = vmul.f32 %v38, %v38
    %v41 = vmul.f32 %v39, %v39
    %v42 = vmul.f32 %v40, -0.5
    %v43 = vmul.f32 %v41, -0.5
    %v44 = vmul.f32 %v42, 1.442695
    %v45 = vpow.pop %v44
    %v46 = vmul.f32 %v43, 1.442695
    %v47 = vpow.pop %v46
    %v48 = vmul.f32 %v38, %v45
    %v49 = vmul.f32 %v39, %v47
    %v50 = vld [vmem:[#allocation5] sm:$0xff]
    %v51 = vld [vmem:[#allocation5 + $0x8] sm:$0xff]
    %v52 = vld [vmem:[#allocation5 + $0x10] sm:$0xff]
    %v53 = vld [vmem:[#allocation5 + $0x18] sm:$0xff]
    %v54 = vld [vmem:[#allocation5 + $0x20] sm:$0xff]
    %v55 = vld [vmem:[#allocation5 + $0x28] sm:$0xff]
    %v56 = vld [vmem:[#allocation5 + $0x30] sm:$0xff]
    %v57 = vld [vmem:[#allocation5 + $0x38] sm:$0xff]
    %v58 = vld [vmem:[#allocation5 + $0x40] sm:$0xff]
    %v59 = vld [vmem:[#allocation5 + $0x48] sm:$0xff]
    %v60 = vld [vmem:[#allocation5 + $0x50] sm:$0xff]
    %v61 = vld [vmem:[#allocation5 + $0x58] sm:$0xff]
    %v62 = vld [vmem:[#allocation5 + $0x60] sm:$0xff]
    %v63 = vld [vmem:[#allocation5 + $0x68] sm:$0xff]
    %v64 = vld [vmem:[#allocation5 + $0x70] sm:$0xff]
    %v65 = vld [vmem:[#allocation5 + $0x78] sm:$0xff]
    %v66 = vld [vmem:[#allocation5 + $0x80] sm:$0xff]
    %v67 = vld [vmem:[#allocation5 + $0x88] sm:$0xff]
    %v68 = vld [vmem:[#allocation5 + $0x90] sm:$0xff]
    %v69 = vld [vmem:[#allocation5 + $0x98] sm:$0xff]
    %v70 = vld [vmem:[#allocation5 + $0xa0] sm:$0xff]
    %v71 = vld [vmem:[#allocation5 + $0xa8] sm:$0xff]
    %v72 = vld [vmem:[#allocation5 + $0xb0] sm:$0xff]
    %v73 = vld [vmem:[#allocation5 + $0xb8] sm:$0xff]
    %v74 = vld [vmem:[#allocation5 + $0xc0] sm:$0xff]
    %v75 = vld [vmem:[#allocation5 + $0xc8] sm:$0xff]
    %v76 = vld [vmem:[#allocation5 + $0xd0] sm:$0xff]
    %v77 = vld [vmem:[#allocation5 + $0xd8] sm:$0xff]
    %v78 = vld [vmem:[#allocation5 + $0xe0] sm:$0xff]
    %v79 = vld [vmem:[#allocation5 + $0xe8] sm:$0xff]
    %v80 = vld [vmem:[#allocation5 + $0xf0] sm:$0xff]
    %v81 = vld [vmem:[#allocation5 + $0xf8] sm:$0xff]
    %v82 = vld [vmem:[#allocation5 + $0x100] sm:$0xff]
    %v83 = vld [vmem:[#allocation5 + $0x108] sm:$0xff]
    %v84 = vld [vmem:[#allocation5 + $0x110] sm:$0xff]
    %v85 = vld [vmem:[#allocation5 + $0x118] sm:$0xff]
    %v86 = vld [vmem:[#allocation5 + $0x120] sm:$0xff]
    %v87 = vld [vmem:[#allocation5 + $0x128] sm:$0xff]
    %v88 = vld [vmem:[#allocation5 + $0x130] sm:$0xff]
    %v89 = vld [vmem:[#allocation5 + $0x138] sm:$0xff]
    %v90 = vld [vmem:[#allocation5 + $0x140] sm:$0xff]
    %v91 = vld [vmem:[#allocation5 + $0x148] sm:$0xff]
    %v92 = vld [vmem:[#allocation5 + $0x150] sm:$0xff]
    %v93 = vld [vmem:[#allocation5 + $0x158] sm:$0xff]
    %v94 = vld [vmem:[#allocation5 + $0x160] sm:$0xff]
    %v95 = vld [vmem:[#allocation5 + $0x168] sm:$0xff]
    %v96 = vld [vmem:[#allocation5 + $0x170] sm:$0xff]
    %v97 = vld [vmem:[#allocation5 + $0x178] sm:$0xff]
    %v98 = vld [vmem:[#allocation5 + $0x180] sm:$0xff]
    %v99 = vld [vmem:[#allocation5 + $0x188] sm:$0xff]
    %v100 = vld [vmem:[#allocation5 + $0x190] sm:$0xff]
    %v101 = vld [vmem:[#allocation5 + $0x198] sm:$0xff]
    %v102 = vld [vmem:[#allocation5 + $0x1a0] sm:$0xff]
    %v103 = vld [vmem:[#allocation5 + $0x1a8] sm:$0xff]
    %v104 = vld [vmem:[#allocation5 + $0x1b0] sm:$0xff]
    %v105 = vld [vmem:[#allocation5 + $0x1b8] sm:$0xff]
    %v106 = vld [vmem:[#allocation5 + $0x1c0] sm:$0xff]
    %v107 = vld [vmem:[#allocation5 + $0x1c8] sm:$0xff]
    %v108 = vld [vmem:[#allocation5 + $0x1d0] sm:$0xff]
    %v109 = vld [vmem:[#allocation5 + $0x1d8] sm:$0xff]
    %v110 = vld [vmem:[#allocation5 + $0x1e0] sm:$0xff]
    %v111 = vld [vmem:[#allocation5 + $0x1e8] sm:$0xff]
    %v112 = vld [vmem:[#allocation5 + $0x1f0] sm:$0xff]
    %v113 = vld [vmem:[#allocation5 + $0x1f8] sm:$0xff]
    %v116 = vcombine.high %v48, %v48
    %v117 = vcombine.high %v49, %v49
    %120 = vmatprep.subr.mxu0 0.0
    %121 = vmatpush1.msra.mxu0 %v65
    %122 = vmatprep.subr.mxu0 0.0
    %123 = vmatpush1.msra.mxu0 %v64
    %124 = vmatprep.subr.mxu0 0.0
    %125 = vmatpush1.msra.mxu0 %v63
    %126 = vmatprep.subr.mxu0 0.0
    %127 = vmatpush1.msra.mxu0 %v62
    %128 = vmatprep.subr.mxu0 0.0
    %129 = vmatpush1.msra.mxu0 %v61
    %130 = vmatprep.subr.mxu0 0.0
    %131 = vmatpush1.msra.mxu0 %v60
    %132 = vmatprep.subr.mxu0 0.0
    %133 = vmatpush1.msra.mxu0 %v59
    %134 = vmatprep.subr.mxu0 0.0
    %135 = vmatpush1.msra.mxu0 %v58
    %136 = vmatprep.subr.mxu0 0.0
    %137 = vmatpush1.msra.mxu0 %v57
    %138 = vmatprep.subr.mxu0 0.0
    %139 = vmatpush1.msra.mxu0 %v56
    %140 = vmatprep.subr.mxu0 0.0
    %141 = vmatpush1.msra.mxu0 %v55
    %142 = vmatprep.subr.mxu0 0.0
    %143 = vmatpush1.msra.mxu0 %v54
    %144 = vmatprep.subr.mxu0 0.0
    %145 = vmatpush1.msra.mxu0 %v53
    %146 = vmatprep.subr.mxu0 0.0
    %147 = vmatpush1.msra.mxu0 %v52
    %148 = vmatprep.subr.mxu0 0.0
    %149 = vmatpush1.msra.mxu0 %v51
    %150 = vmatprep.subr.mxu0 0.0
    %151 = vmatpush1.msra.mxu0 %v50
    %152 = vmatprep.subr.mxu0 0.0
    %153 = vmatpush2.msra.mxu0 %v81
    %154 = vmatprep.subr.mxu0 0.0
    %155 = vmatpush2.msra.mxu0 %v80
    %156 = vmatprep.subr.mxu0 0.0
    %157 = vmatpush2.msra.mxu0 %v79
    %158 = vmatprep.subr.mxu0 0.0
    %159 = vmatpush2.msra.mxu0 %v78
    %160 = vmatprep.subr.mxu0 0.0
    %161 = vmatpush2.msra.mxu0 %v77
    %162 = vmatprep.subr.mxu0 0.0
    %163 = vmatpush2.msra.mxu0 %v76
    %164 = vmatprep.subr.mxu0 0.0
    %165 = vmatpush2.msra.mxu0 %v75
    %166 = vmatprep.subr.mxu0 0.0
    %167 = vmatpush2.msra.mxu0 %v74
    %168 = vmatprep.subr.mxu0 0.0
    %169 = vmatpush2.msra.mxu0 %v73
    %170 = vmatprep.subr.mxu0 0.0
    %171 = vmatpush2.msra.mxu0 %v72
    %172 = vmatprep.subr.mxu0 0.0
    %173 = vmatpush2.msra.mxu0 %v71
    %174 = vmatprep.subr.mxu0 0.0
    %175 = vmatpush2.msra.mxu0 %v70
    %176 = vmatprep.subr.mxu0 0.0
    %177 = vmatpush2.msra.mxu0 %v69
    %178 = vmatprep.subr.mxu0 0.0
    %179 = vmatpush2.msra.mxu0 %v68
    %180 = vmatprep.subr.mxu0 0.0
    %181 = vmatpush2.msra.mxu0 %v67
    %182 = vmatprep.subr.mxu0 0.0
    %183 = vmatpush2.msra.mxu0 %v66
    %184 = vmatprep.mubr.f32.mxu0 %v116
    %185 = vmatmul.mubr.f32.gmra.mxu0 %v48
    %v186 = vpop.f32.mrf.mxu0
    %v187 = vadd.f32 0.0, %v186
    %v188 = vpop.f32.mrf.mxu0
    %189 = vdwg.mxu0
    %190 = vmatprep.subr.mxu0 0.0
    %191 = vmatpush1.msra.mxu0 %v97
    %192 = vmatprep.subr.mxu0 0.0
    %193 = vmatpush1.msra.mxu0 %v96
    %194 = vmatprep.subr.mxu0 0.0
    %195 = vmatpush1.msra.mxu0 %v95
    %196 = vmatprep.subr.mxu0 0.0
    %197 = vmatpush1.msra.mxu0 %v94
    %198 = vmatprep.subr.mxu0 0.0
    %199 = vmatpush1.msra.mxu0 %v93
    %200 = vmatprep.subr.mxu0 0.0
    %201 = vmatpush1.msra.mxu0 %v92
    %202 = vmatprep.subr.mxu0 0.0
    %203 = vmatpush1.msra.mxu0 %v91
    %204 = vmatprep.subr.mxu0 0.0
    %205 = vmatpush1.msra.mxu0 %v90
    %206 = vmatprep.subr.mxu0 0.0
    %207 = vmatpush1.msra.mxu0 %v89
    %208 = vmatprep.subr.mxu0 0.0
    %209 = vmatpush1.msra.mxu0 %v88
    %210 = vmatprep.subr.mxu0 0.0
    %211 = vmatpush1.msra.mxu0 %v87
    %212 = vmatprep.subr.mxu0 0.0
    %213 = vmatpush1.msra.mxu0 %v86
    %214 = vmatprep.subr.mxu0 0.0
    %215 = vmatpush1.msra.mxu0 %v85
    %216 = vmatprep.subr.mxu0 0.0
    %217 = vmatpush1.msra.mxu0 %v84
    %218 = vmatprep.subr.mxu0 0.0
    %219 = vmatpush1.msra.mxu0 %v83
    %220 = vmatprep.subr.mxu0 0.0
    %221 = vmatpush1.msra.mxu0 %v82
    %222 = vmatprep.subr.mxu0 0.0
    %223 = vmatpush2.msra.mxu0 %v113
    %224 = vmatprep.subr.mxu0 0.0
    %225 = vmatpush2.msra.mxu0 %v112
    %226 = vmatprep.subr.mxu0 0.0
    %227 = vmatpush2.msra.mxu0 %v111
    %228 = vmatprep.subr.mxu0 0.0
    %229 = vmatpush2.msra.mxu0 %v110
    %230 = vmatprep.subr.mxu0 0.0
    %231 = vmatpush2.msra.mxu0 %v109
    %232 = vmatprep.subr.mxu0 0.0
    %233 = vmatpush2.msra.mxu0 %v108
    %234 = vmatprep.subr.mxu0 0.0
    %235 = vmatpush2.msra.mxu0 %v107
    %236 = vmatprep.subr.mxu0 0.0
    %237 = vmatpush2.msra.mxu0 %v106
    %238 = vmatprep.subr.mxu0 0.0
    %239 = vmatpush2.msra.mxu0 %v105
    %240 = vmatprep.subr.mxu0 0.0
    %241 = vmatpush2.msra.mxu0 %v104
    %242 = vmatprep.subr.mxu0 0.0
    %243 = vmatpush2.msra.mxu0 %v103
    %244 = vmatprep.subr.mxu0 0.0
    %245 = vmatpush2.msra.mxu0 %v102
    %246 = vmatprep.subr.mxu0 0.0
    %247 = vmatpush2.msra.mxu0 %v101
    %248 = vmatprep.subr.mxu0 0.0
    %249 = vmatpush2.msra.mxu0 %v100
    %250 = vmatprep.subr.mxu0 0.0
    %251 = vmatpush2.msra.mxu0 %v99
    %252 = vmatprep.subr.mxu0 0.0
    %253 = vmatpush2.msra.mxu0 %v98
    %254 = vmatprep.mubr.f32.mxu0 %v117
    %255 = vmatmul.mubr.f32.gmra.mxu0 %v49
    %v256 = vpop.f32.mrf.mxu0
    %v257 = vadd.f32 %v187, %v256
    %v258 = vpop.f32.mrf.mxu0
    %259 = vdwg.mxu0
    %v260 = vmul.f32 %v257, 0.25
    %261 = vst [vmem:[#allocation7] sm:$0xf] %v260
    // Predicated region
    $region18: #{tpu_custom_call.1} parent=1 // pred_check
      _
    $region19: #{tpu_custom_call.1} parent=1 // pred_check_branch
      %263 = sbr.rel (0) target = $region21
    $region20: #{tpu_custom_call.1} parent=1 // pred_region
      %s265 = ssub.s32 64, 64
      %266 = vsyncadd [#allocation4], %s265
      %s268 = sshll.u32 [#allocation7], 4
      %s269 = int_to_ptr.vmem [resolvable:$true] %s268
      %271 = dma.vmem_to_hbm [thread:$0]  %s269, 64, %s2, [#allocation4]
    $region21: #{tpu_custom_call.1} parent=1 // pred_fallthru
      _
    // Predicated region
    $region22: #{tpu_custom_call.1} parent=1 // pred_check
      _
    $region23: #{tpu_custom_call.1} parent=1 // pred_check_branch
      %273 = sbr.rel (0) target = $region25
    $region24: #{tpu_custom_call.1} parent=1 // pred_region
      %274 = dma.done [#allocation4], 64
    $region25: #{tpu_custom_call.1} parent=1 // pred_fallthru
      _
    %275 = vsyncpa [#allocation3], 1
    %276 = vsyncpa [#allocation6], 1
    %277 = vsyncpa [#allocation4], 1

</llo_original>
